<compile_context>
chip_gen: v5e
topology: v5e:2x2
jax: 0.10.0
libtpu: 0.0.40
codegen_flags: <defaults>
</compile_context>

<pallas_src>
import jax
import jax.numpy as jnp
from jax.experimental import pallas as pl
from jax.experimental.pallas import tpu as pltpu

_LANE = 128
_MiB = 1024 * 1024


def _relu_kernel(x_ref, o_ref):
    # Pure VPU elementwise max over the whole VMEM tile.
    # TODO(synk): fuse quantizeAE here once it is defined (free: DMA-bound).
    o_ref[...] = jnp.maximum(x_ref[...], 0)


def _sublane_for(dtype) -> int:
    # Sub-32-bit dtypes pack along sublanes: 8 (f32) / 16 (bf16) / 32 (i8).
    return max(8, 32 // jnp.dtype(dtype).itemsize)


def _round_up(x: int, m: int) -> int:
    return ((x + m - 1) // m) * m


def _vmem_budget_bytes() -> int:
    """Generation-aware budget for 2x(in)+2x(out) double-buffered tiles."""
    try:
        info = pltpu.get_tpu_info()
        vmem = int(getattr(info, "vmem_capacity_bytes", 0)) or (64 * _MiB)
    except Exception:  # query unavailable: assume the smallest (v7x per-TC)
        vmem = 64 * _MiB
    # Never more than half of physical VMEM, hard-capped at 48 MiB:
    #   v7x (64 MiB/TC)  -> 32 MiB budget -> ~6.4 MiB tiles
    #   v5e/v6e (128 MiB) -> 48 MiB budget -> ~9.6 MiB tiles
    return min(48 * _MiB, vmem // 2)


def relu_pallas(x: jax.Array, inplace: bool = False) -> jax.Array:
    """Elementwise ReLU via a tiled, pipelined Pallas TPU kernel (any shape).

    `inplace=True` adds input/output aliasing (mirror of torch ReLU(inplace));
    it only saves the output allocation when the caller donates `x`.
    """
    orig_shape = x.shape
    dtype = x.dtype
    n = int(x.size)
    if n == 0:
        return x

    itemsize = jnp.dtype(dtype).itemsize
    sublane = _sublane_for(dtype)

    budget = _vmem_budget_bytes()
    tile_target = budget // 5  # 4x tile (double-buffered in+out) + ~25% headroom

    if n % _LANE == 0:
        # Lane+sublane dense slab: widest column width (multiple of 128) that
        # divides n exactly, so the reshape is a free bitcast (no pad/slice).
        cols = _LANE
        for c in (4096, 2048, 1024, 512, 256):
            if n % c == 0:
                cols = c
                break
        rows = n // cols

        # Row-block size: ~tile_target bytes per block, rounded to the dtype's
        # sublane packing; force >=2 (even) grid steps whenever possible so
        # the grid splits across both TensorCores on v7x (no-op on v5e/v6e).
        blocks_for_tile = pl.cdiv(rows * cols * itemsize, tile_target)
        min_blocks = 2 if rows >= 2 * sublane else 1
        num_blocks = max(blocks_for_tile, min_blocks)
        if num_blocks > 1 and num_blocks % 2:
            num_blocks += 1  # even step count balances the two TCs
        block_rows = _round_up(pl.cdiv(rows, num_blocks), sublane)
        if block_rows >= rows:
            block_rows = rows  # full-extent block (tiny inputs), grid=(1,)
        block_shape = (block_rows, cols)
        grid = (pl.cdiv(rows, block_rows),)
        index_map = lambda i: (i, 0)
        slab = x.reshape(rows, cols)
    else:
        # Ragged fallback (n % 128 != 0): view the flat array as (1, n) and
        # let Pallas mask the partial final lane-block.  No HBM pad/slice
        # round-trip: traffic is exactly read-n + write-n.
        if n <= 8 * _LANE:
            block_cols = n  # full-extent block, always legal
        else:
            # A (1, C) tile is sublane-padded in VMEM to ~32*C bytes (any
            # dtype), so size the block so its *physical* footprint matches
            # tile_target; keep >=2 grid steps.
            by_tile = max(_LANE, ((tile_target // 32) // _LANE) * _LANE)
            block_cols = min(by_tile, _round_up(pl.cdiv(n, 2), _LANE))
        block_shape = (1, block_cols)
        grid = (pl.cdiv(n, block_cols),)
        index_map = lambda i: (0, i)
        slab = x.reshape(1, n)

    block_bytes = block_shape[0] * block_shape[1] * itemsize
    vmem_limit = min(100 * _MiB, max(budget, 5 * block_bytes))

    out_slab = pl.pallas_call(
        _relu_kernel,
        out_shape=jax.ShapeDtypeStruct(slab.shape, dtype),
        grid=grid,
        in_specs=[pl.BlockSpec(block_shape, index_map)],
        out_specs=pl.BlockSpec(block_shape, index_map),
        input_output_aliases=({0: 0} if inplace else {}),
        cost_estimate=pl.CostEstimate(
            flops=n, transcendentals=0, bytes_accessed=2 * n * itemsize),
        compiler_params=pltpu.CompilerParams(
            # Blocks are fully independent: shard the grid across
            # TensorCores (megacore on v7x); harmless on v5e/v6e.
            dimension_semantics=("parallel",),
            vmem_limit_bytes=vmem_limit,
        ),
    )(slab)

    # quantizeAE: identity passthrough (see TODO above).
    return out_slab.reshape(orig_shape)


if __name__ == "__main__":
    key = jax.random.PRNGKey(0)
    k1, k2, k3, k4 = jax.random.split(key, 4)

    # Primary test: NCHW, small shapes (batch=2, channels=4, spatial=16x16).
    x = jax.random.normal(k1, (2, 4, 16, 16), dtype=jnp.float32)
    y = jax.block_until_ready(relu_pallas(x))
    assert y.shape == x.shape and y.dtype == x.dtype
    assert bool(jnp.allclose(y, jnp.maximum(x, 0.0))), "Pallas ReLU mismatch"

    # Multi-block path: >=2 grid steps with a partial last row-block.
    x2 = jax.random.normal(k2, (2, 64, 28, 28), dtype=jnp.float32)
    y2 = jax.block_until_ready(relu_pallas(x2))
    assert bool(jnp.allclose(y2, jnp.maximum(x2, 0.0))), "multi-block mismatch"

    # Ragged path (n % 128 != 0): (1, n) view + masked partial lane-block.
    x3 = jax.random.normal(k3, (3, 5, 7, 11), dtype=jnp.float32)
    y3 = jax.block_until_ready(relu_pallas(x3))
    assert bool(jnp.allclose(y3, jnp.maximum(x3, 0.0))), "ragged-path mismatch"

    # inplace=True exercises input/output aliasing (mirrors torch inplace).
    x4 = jax.random.normal(k4, (2, 4, 16, 16), dtype=jnp.bfloat16)
    ref4 = jax.block_until_ready(jnp.maximum(x4, 0))
    y4 = jax.block_until_ready(relu_pallas(x4, inplace=True))
    assert bool(jnp.allclose(y4, ref4)), "inplace/bf16 mismatch"

    print("KERNEL_OK")
</pallas_src>

<mosaic_0001>
module attributes {stable_mosaic.version = 11 : i64} {
  func.func @_relu_kernel(%arg0: i32, %arg1: memref<1x2048xf32, #tpu.memory_space<vmem>>, %arg2: memref<1x2048xf32, #tpu.memory_space<vmem>>) attributes {dimension_semantics = [#tpu.dimension_semantics<parallel>], iteration_bounds = array<i64: 1>, scalar_prefetch = 0 : i64, scratch_operands = 0 : i64, tpu.core_type = #tpu.core_type<tc>, window_params = [{transform_indices = @transform_0, window_bounds = array<i64: 1, 2048>}, {transform_indices = @transform_1, window_bounds = array<i64: 1, 2048>}]} {
    %c0 = arith.constant 0 : index
    %c0_0 = arith.constant 0 : index
    %0 = vector.load %arg1[%c0, %c0_0] : memref<1x2048xf32, #tpu.memory_space<vmem>>, vector<1x2048xf32>
    %cst = arith.constant 0.000000e+00 : f32
    %1 = vector.broadcast %cst : f32 to vector<1x2048xf32>
    %2 = arith.maximumf %0, %1 : vector<1x2048xf32>
    %c0_1 = arith.constant 0 : index
    %c0_2 = arith.constant 0 : index
    %3 = vector.load %arg2[%c0_1, %c0_2] : memref<1x2048xf32, #tpu.memory_space<vmem>>, vector<1x2048xf32>
    tpu.vector_store %arg2[%c0_1, %c0_2], %2 {strides = array<i32>} : memref<1x2048xf32, #tpu.memory_space<vmem>>, vector<1x2048xf32>,
    return
  }
  func.func @transform_0(%arg0: i32) -> (i32, i32) {
    %c0_i32 = arith.constant 0 : i32
    %c0_i32_0 = arith.constant 0 : i32
    return %arg0, %c0_i32 : i32, i32
  }
  func.func @transform_1(%arg0: i32) -> (i32, i32) {
    %c0_i32 = arith.constant 0 : i32
    %c0_i32_0 = arith.constant 0 : i32
    return %arg0, %c0_i32 : i32, i32
  }
}

</mosaic_0001>

<llo_original>
// kernel: tpu_custom_call.1
$region0: #{tpu_custom_call.1}
  #allocation0 [shape = 'u32[]', space=smem, size = 0x4, offset = 0x4, fixed_abs, tag = 'smem constant byte address 0x4 - core index']
  #allocation1 [shape = 'u32[72,128]{1,0:T(1,128)}', space=vmem, size = 0x9000, scoped, tag = 'internal scratch']
  %s0 = inlined_call_operand.hbm [shape: f32[1,2048], index: 0, kind: input, shape index: {}]
  %s1 = inlined_call_operand.hbm [shape: f32[1,2048], index: 1, kind: output, shape index: {}]
  %s2 = sld [smem:[#allocation0]]
  $region18: #{tpu_custom_call.1} parent=0
    _
  %s4 = ssub.s32 1, %s2
  %s5 = scalar_select 0, %s4, %s2
  $region1: #{tpu_custom_call.1} parent=0
    #allocation2 [shape = 'u8[8192]{0}', space=vmem, size = 0x2000, scoped, tag = 'input window, operand 0, single buffered']
    #allocation3 [shape = 's32[1]{0}', space=sflag, size = 0x4, scoped, tag = 'scoped memory for tpu_custom_call.1']
    #allocation4 [shape = 's32[1]{0}', space=sflag, size = 0x4, scoped, tag = 'scoped memory for tpu_custom_call.1']
    #allocation5 [shape = 'u8[8192]{0}', space=vmem, size = 0x2000, scoped, tag = 'output window, operand 0, single buffered']
    %6 = vsyncpa [#allocation3], 0
    %7 = vsyncpa [#allocation4], 0
    // Predicated region
    $region2: #{tpu_custom_call.1} parent=1 // pred_check
      _
    $region3: #{tpu_custom_call.1} parent=1 // pred_check_branch
      %9 = sbr.rel (0) target = $region5
    $region4: #{tpu_custom_call.1} parent=1 // pred_region
      %11 = vsyncadd [#allocation3], 0
      %s13 = sshll.u32 %s0, 4
      %s14 = int_to_ptr.hbm [resolvable:$true] %s13
      %s15 = sshll.u32 [#allocation2], 4
      %s16 = int_to_ptr.vmem [resolvable:$true] %s15
      %18 = dma.hbm_to_vmem [thread:$0]  %s14, 256, %s16, [#allocation3]
    $region5: #{tpu_custom_call.1} parent=1 // pred_fallthru
      _
    // Predicated region
    $region6: #{tpu_custom_call.1} parent=1 // pred_check
      _
    $region7: #{tpu_custom_call.1} parent=1 // pred_check_branch
      %20 = sbr.rel (0) target = $region9
    $region8: #{tpu_custom_call.1} parent=1 // pred_region
      %22 = dma.done [#allocation3], 256
    $region9: #{tpu_custom_call.1} parent=1 // pred_fallthru
      _
    %v23 = vld [vmem:[#allocation2] sm:$0xff]
    %v24 = vld [vmem:[#allocation2 + $0x8] sm:$0xff]
    %v25 = vmax.f32 %v23, 0.0
    %v26 = vmax.f32 %v24, 0.0
    %27 = vst [vmem:[#allocation5] sm:$0xff] %v25
    %28 = vst [vmem:[#allocation5 + $0x8] sm:$0xff] %v26
    // Predicated region
    $region10: #{tpu_custom_call.1} parent=1 // pred_check
      _
    $region11: #{tpu_custom_call.1} parent=1 // pred_check_branch
      %30 = sbr.rel (0) target = $region13
    $region12: #{tpu_custom_call.1} parent=1 // pred_region
      %32 = vsyncadd [#allocation4], 0
      %s34 = sshll.u32 [#allocation5], 4
      %s35 = int_to_ptr.vmem [resolvable:$true] %s34
      %s36 = sshll.u32 %s1, 4
      %s37 = int_to_ptr.hbm [resolvable:$true] %s36
      %39 = dma.vmem_to_hbm [thread:$0]  %s35, 256, %s37, [#allocation4]
    $region13: #{tpu_custom_call.1} parent=1 // pred_fallthru
      _
    // Predicated region
    $region14: #{tpu_custom_call.1} parent=1 // pred_check
      _
    $region15: #{tpu_custom_call.1} parent=1 // pred_check_branch
      %41 = sbr.rel (0) target = $region17
    $region16: #{tpu_custom_call.1} parent=1 // pred_region
      %43 = dma.done [#allocation4], 256
    $region17: #{tpu_custom_call.1} parent=1 // pred_fallthru
      _
    %44 = vsyncpa [#allocation3], 1
    %45 = vsyncpa [#allocation4], 1

</llo_original>
